<compile_context>
chip_gen: v7x
topology: tpu7x:2x2x1
jax: 0.10.0
libtpu: 0.0.40
codegen_flags: <defaults>
</compile_context>

<pallas_src>
import functools

import numpy as np
import jax
import jax.numpy as jnp
from jax.experimental import pallas as pl
from jax.experimental.pallas import tpu as pltpu

LEAKY_SLOPE = 0.01  # torch.nn.LeakyReLU default negative_slope


def _round_up(x, m):
    return ((x + m - 1) // m) * m


def _leaky_relu(h):
    return jnp.where(h > 0, h, LEAKY_SLOPE * h)


# ---------------------------------------------------------------------------
# Fused kernel
# ---------------------------------------------------------------------------
def _gm_kernel(obs_ref, a1_ref, a2_ref, w0_ref, b_ref, *rest,
               p1_dim, p2_dim, r1, r2, pad_w, pad_out,
               n_branch, n_layers, a1_is_index, a2_is_index):
    """Fused GameModelNetwork forward.

    obs_ref : (tb, pad_out) f32   -- obs zero-padded to a 128-lane multiple
    a1_ref  : (tb, 1) int32 action index, or (tb, p1_dim) f32 if already 2-D
    a2_ref  : (tb, 1) int32 action index, or (tb, p2_dim) f32 if already 2-D
    w0_ref  : (R0, F) layer-0 weight; rows = [obs(pad_out) | a1 | a2] at
              8-aligned offsets 0 / r1 / r2.  F = n_branch * pad_w; branch b
              occupies columns [b*pad_w, (b+1)*pad_w) (extra columns are zero).
    b_ref   : (L, n_branch, 1, pad_w) stacked biases.
    rest    : (w_rest_ref, out_ref) if n_layers > 1 else (out_ref,)
              w_rest_ref : (L-1, n_branch, pad_w, pad_w) per-branch weights.
    out_ref : (tb, pad_out) f32 -- lane-dense; wrapper slices to obs_dim.
    Padded lanes stay exactly zero through every layer (zero weights/biases).
    """
    if n_layers > 1:
        w_rest_ref, out_ref = rest
    else:
        (out_ref,) = rest
        w_rest_ref = None

    obs = obs_ref[...]                       # (tb, pad_out)
    tb = obs.shape[0]

    def mm(x, w):
        # MXU matmul; cast LHS to the weight dtype (bf16 option) at the dot,
        # always accumulating in f32.
        if w.dtype != jnp.float32:
            x = x.astype(w.dtype)
        return jnp.dot(x, w, preferred_element_type=jnp.float32)

    # ---- layer 0: x @ W0 with x = [obs | onehot(a1) | onehot(a2)] folded in.
    h = mm(obs, w0_ref[0:r1, :])             # K = pad_out (padded rows are 0)

    if a1_is_index:
        oh1 = (jax.lax.broadcasted_iota(jnp.int32, (tb, p1_dim), 1)
               == a1_ref[...]).astype(jnp.float32)
    else:
        oh1 = a1_ref[...]
    h = h + mm(oh1, w0_ref[r1:r1 + p1_dim, :])

    if a2_is_index:
        oh2 = (jax.lax.broadcasted_iota(jnp.int32, (tb, p2_dim), 1)
               == a2_ref[...]).astype(jnp.float32)
    else:
        oh2 = a2_ref[...]
    h = h + mm(oh2, w0_ref[r2:r2 + p2_dim, :])

    # Split the wide (tb, F) result into 128-aligned per-branch slabs + bias.
    hs = [h[:, b * pad_w:(b + 1) * pad_w] + b_ref[0, b]
          for b in range(n_branch)]

    # ---- hidden / output layers: per-branch lane-dense (pad_w x pad_w) matmuls.
    for l in range(1, n_layers):
        hs = [mm(_leaky_relu(hs[b]), w_rest_ref[l - 1, b]) + b_ref[l, b]
              for b in range(n_branch)]

    # ---- epilogue (lane-dense; padded columns are all zero -> stay zero)
    if n_branch == 3:                        # residual gating (forget/delta/new)
        f = hs[0][:, 0:pad_out]
        d = hs[1][:, 0:pad_out]
        n = hs[2][:, 0:pad_out]
        out = f * (obs + d) + (1.0 - f) * n
    else:
        out = hs[0][:, 0:pad_out]
    out_ref[...] = out.astype(out_ref.dtype)


# ---------------------------------------------------------------------------
# Parameter init (deterministic, PyTorch-Linear-style uniform bounds)
# ---------------------------------------------------------------------------
def _init_mlp_params(key, sizes):
    """sizes = [in, h0, ..., out]; returns [(W0, b0), (W1, b1), ...] in f32."""
    params = []
    for i in range(len(sizes) - 1):
        fan_in, fan_out = sizes[i], sizes[i + 1]
        key, kw, kb = jax.random.split(key, 3)
        bound = 1.0 / np.sqrt(fan_in)
        w = jax.random.uniform(kw, (fan_in, fan_out), jnp.float32, -bound, bound)
        b = jax.random.uniform(kb, (fan_out,), jnp.float32, -bound, bound)
        params.append((w, b))
    return params


# ---------------------------------------------------------------------------
# Module wrapper
# ---------------------------------------------------------------------------
class GameModelNetwork:
    def __init__(self, obs_dim, p1_action_dim, p2_action_dim,
                 hidden_layer_sizes=None, residual=False, seed=0,
                 weight_dtype=jnp.float32):
        hidden_layer_sizes = list(hidden_layer_sizes or [])
        self.obs_dim = obs_dim
        self.p1_action_dim = p1_action_dim
        self.p2_action_dim = p2_action_dim
        self.residual = residual
        self.input_dim = obs_dim + p1_action_dim + p2_action_dim

        sizes = [self.input_dim] + hidden_layer_sizes + [obs_dim]
        self.n_layers = len(sizes) - 1
        self.n_branch = 3 if residual else 1
        # per-branch feature width / output width padded to whole 128-lane vregs
        self.pad_w = _round_up(max(sizes[1:]), 128)
        self.pad_out = _round_up(obs_dim, 128)
        # 8-aligned row offsets of [obs | a1 | a2] segments inside packed w0
        self.r1 = self.pad_out
        self.r2 = self.r1 + _round_up(p1_action_dim, 8)
        self.r0_rows = self.r2 + _round_up(p2_action_dim, 8)
        self._weight_dtype = weight_dtype

        key = jax.random.PRNGKey(seed)
        if residual:
            kf, kd, kn = jax.random.split(key, 3)
            # branch order inside packed buffers: forget, delta, new
            branches = [_init_mlp_params(kf, sizes),
                        _init_mlp_params(kd, sizes),
                        _init_mlp_params(kn, sizes)]
        else:
            branches = [_init_mlp_params(key, sizes)]
        self._branches = branches            # raw params kept for the reference

        self._pack_params(branches)
        self._jit_forward = jax.jit(self._forward)

    # ---- packing: per-branch, lane-aligned, zero-padded ----
    def _pack_params(self, branches):
        L, Pw, nb = self.n_layers, self.pad_w, self.n_branch
        F = nb * Pw
        obs_dim, p1, p2 = self.obs_dim, self.p1_action_dim, self.p2_action_dim
        r1, r2, R0 = self.r1, self.r2, self.r0_rows

        w0p = np.zeros((R0, F), np.float32)
        b_all = np.zeros((L, nb, 1, Pw), np.float32)
        w_rest = np.zeros((L - 1, nb, Pw, Pw), np.float32) if L > 1 else None

        for b, params in enumerate(branches):
            col = b * Pw
            for l, (w, bias) in enumerate(params):
                w = np.asarray(w)
                bias = np.asarray(bias)
                out_l = w.shape[1]
                b_all[l, b, 0, :out_l] = bias
                if l == 0:
                    w0p[0:obs_dim,  col:col + out_l] = w[0:obs_dim]
                    w0p[r1:r1 + p1, col:col + out_l] = w[obs_dim:obs_dim + p1]
                    w0p[r2:r2 + p2, col:col + out_l] = w[obs_dim + p1:]
                else:
                    in_l = w.shape[0]
                    w_rest[l - 1, b, :in_l, :out_l] = w

        wdt = self._weight_dtype
        self._w0p = jnp.asarray(w0p, dtype=wdt)
        self._b_all = jnp.asarray(b_all)                       # biases stay f32
        self._w_rest = jnp.asarray(w_rest, dtype=wdt) if L > 1 else None

    # ---- batch tiling ----
    @staticmethod
    def _pick_tile_b(Bp):
        """Bp is already a multiple of 8 (of 16 when > 8)."""
        if Bp <= 8:
            return Bp
        hi = min(512, Bp // 2)
        hi -= hi % 8
        # prefer the largest tile giving an even number of >=2 grid steps
        for t in range(hi, 7, -8):
            if Bp % t == 0 and (Bp // t) % 2 == 0:
                return t
        for t in range(hi, 7, -8):
            if Bp % t == 0:
                return t
        return Bp

    @staticmethod
    def _prep_action(action):
        if action.ndim < 2:               # index vector -> one-hot built in-kernel
            return action.astype(jnp.int32).reshape(-1, 1), True
        return action.astype(jnp.float32), False

    # ---- Pallas forward (jitted as a whole) ----
    def _forward(self, obs, p1_action, p2_action):
        obs = obs.astype(jnp.float32)
        B = obs.shape[0]
        a1, a1_idx = self._prep_action(p1_action)
        a2, a2_idx = self._prep_action(p2_action)

        # lane-dense obs / output: pad feature dim to a 128-lane multiple
        if self.pad_out > self.obs_dim:
            obs = jnp.pad(obs, ((0, 0), (0, self.pad_out - self.obs_dim)))

        # pad batch so blocks are sublane-aligned and (when B > 8) the grid has
        # an even number of steps for the two v7x TensorCores
        Bp = _round_up(B, 8) if B <= 8 else _round_up(B, 16)
        tile_b = self._pick_tile_b(Bp)
        if Bp != B:
            pad = Bp - B
            obs = jnp.pad(obs, ((0, pad), (0, 0)))
            a1 = jnp.pad(a1, ((0, pad), (0, 0)))
            a2 = jnp.pad(a2, ((0, pad), (0, 0)))

        grid = (Bp // tile_b,)

        in_specs = [
            pl.BlockSpec((tile_b, self.pad_out), lambda i: (i, 0)),
            pl.BlockSpec((tile_b, a1.shape[1]), lambda i: (i, 0)),
            pl.BlockSpec((tile_b, a2.shape[1]), lambda i: (i, 0)),
            pl.BlockSpec(self._w0p.shape, lambda i: (0, 0)),
            pl.BlockSpec(self._b_all.shape, lambda i: (0, 0, 0, 0)),
        ]
        args = [obs, a1, a2, self._w0p, self._b_all]
        if self.n_layers > 1:
            in_specs.append(pl.BlockSpec(self._w_rest.shape,
                                         lambda i: (0, 0, 0, 0)))
            args.append(self._w_rest)

        kernel = functools.partial(
            _gm_kernel,
            p1_dim=self.p1_action_dim, p2_dim=self.p2_action_dim,
            r1=self.r1, r2=self.r2, pad_w=self.pad_w, pad_out=self.pad_out,
            n_branch=self.n_branch, n_layers=self.n_layers,
            a1_is_index=a1_idx, a2_is_index=a2_idx)

        out_pad = pl.pallas_call(
            kernel,
            out_shape=jax.ShapeDtypeStruct((Bp, self.pad_out), jnp.float32),
            grid_spec=pltpu.PrefetchScalarGridSpec(
                num_scalar_prefetch=0, grid=grid,
                in_specs=in_specs,
                out_specs=pl.BlockSpec((tile_b, self.pad_out),
                                       lambda i: (i, 0))),
            compiler_params=pltpu.CompilerParams(
                dimension_semantics=("parallel",)),
        )(*args)

        return out_pad[:B, :self.obs_dim]

    def __call__(self, obs, p1_action, p2_action):
        return self._jit_forward(obs, p1_action, p2_action)

    # ---- pure-JAX reference (uses the raw, unfused f32 parameters) ----
    def reference(self, obs, p1_action, p2_action):
        if p1_action.ndim < 2:
            p1_action = jax.nn.one_hot(p1_action, self.p1_action_dim,
                                       dtype=jnp.float32)
        if p2_action.ndim < 2:
            p2_action = jax.nn.one_hot(p2_action, self.p2_action_dim,
                                       dtype=jnp.float32)
        x = jnp.concatenate([obs, p1_action, p2_action], axis=1)

        def mlp(xx, params):
            h = xx
            for i, (w, b) in enumerate(params):
                h = h @ w + b
                if i < len(params) - 1:
                    h = jnp.where(h > 0, h, LEAKY_SLOPE * h)
            return h

        if self.residual:
            f = mlp(x, self._branches[0])
            d = mlp(x, self._branches[1])
            n = mlp(x, self._branches[2])
            return f * (obs + d) + (1 - f) * n
        return mlp(x, self._branches[0])


# ---------------------------------------------------------------------------
if __name__ == "__main__":
    OBS_DIM = 32
    P1_DIM = 8
    P2_DIM = 8
    HIDDEN = [64, 64]

    key = jax.random.PRNGKey(0)
    k_obs, k_a1, k_a2, k_obs2, k_b1, k_b2 = jax.random.split(key, 6)

    ok = True

    # small aligned batch, all three architectures
    B = 8
    obs = jax.random.normal(k_obs, (B, OBS_DIM), dtype=jnp.float32)
    p1_action = jax.random.randint(k_a1, (B,), 0, P1_DIM)
    p2_action = jax.random.randint(k_a2, (B,), 0, P2_DIM)
    for hidden, residual in [(HIDDEN, False), (HIDDEN, True), ([], True)]:
        net = GameModelNetwork(OBS_DIM, P1_DIM, P2_DIM,
                               hidden_layer_sizes=hidden,
                               residual=residual, seed=42)
        out = jax.block_until_ready(net(obs, p1_action, p2_action))
        ref = net.reference(obs, p1_action, p2_action)
        if out.shape != (B, OBS_DIM):
            ok = False
        if not jnp.allclose(out, ref, atol=2e-4, rtol=2e-4):
            ok = False

    # larger, unaligned batch: exercises batch padding, multi-step parallel
    # grid, lane-padded output slicing
    B2 = 100
    obs2 = jax.random.normal(k_obs2, (B2, OBS_DIM), dtype=jnp.float32)
    p1b = jax.random.randint(k_b1, (B2,), 0, P1_DIM)
    p2b = jax.random.randint(k_b2, (B2,), 0, P2_DIM)
    net2 = GameModelNetwork(OBS_DIM, P1_DIM, P2_DIM,
                            hidden_layer_sizes=HIDDEN,
                            residual=True, seed=7)
    out2 = jax.block_until_ready(net2(obs2, p1b, p2b))
    ref2 = net2.reference(obs2, p1b, p2b)
    if out2.shape != (B2, OBS_DIM):
        ok = False
    if not jnp.allclose(out2, ref2, atol=2e-4, rtol=2e-4):
        ok = False

    if ok:
        print("KERNEL_OK")
</pallas_src>

<mosaic_0001>
module attributes {stable_mosaic.version = 11 : i64} {
  func.func @_gm_kernel(%arg0: i32, %arg1: memref<8x128xf32, #tpu.memory_space<vmem>>, %arg2: memref<8x1xi32, #tpu.memory_space<vmem>>, %arg3: memref<8x1xi32, #tpu.memory_space<vmem>>, %arg4: memref<144x128xf32, #tpu.memory_space<vmem>>, %arg5: memref<3x1x1x128xf32, #tpu.memory_space<vmem>>, %arg6: memref<2x1x128x128xf32, #tpu.memory_space<vmem>>, %arg7: memref<8x128xf32, #tpu.memory_space<vmem>>) attributes {dimension_semantics = [#tpu.dimension_semantics<parallel>], iteration_bounds = array<i64: 1>, scalar_prefetch = 0 : i64, scratch_operands = 0 : i64, tpu.core_type = #tpu.core_type<tc>, window_params = [{transform_indices = @transform_0, window_bounds = array<i64: 8, 128>}, {transform_indices = @transform_1, window_bounds = array<i64: 8, 1>}, {transform_indices = @transform_2, window_bounds = array<i64: 8, 1>}, {pipeline_mode = #tpu.pipeline_mode<synchronous>, transform_indices = @transform_3, window_bounds = array<i64: 144, 128>}, {pipeline_mode = #tpu.pipeline_mode<synchronous>, transform_indices = @transform_4, window_bounds = array<i64: 3, 1, 1, 128>}, {pipeline_mode = #tpu.pipeline_mode<synchronous>, transform_indices = @transform_5, window_bounds = array<i64: 2, 1, 128, 128>}, {transform_indices = @transform_6, window_bounds = array<i64: 8, 128>}]} {
    %c0 = arith.constant 0 : index
    %c0_0 = arith.constant 0 : index
    %0 = vector.load %arg1[%c0, %c0_0] : memref<8x128xf32, #tpu.memory_space<vmem>>, vector<8x128xf32>
    %c0_1 = arith.constant 0 : index
    %c0_2 = arith.constant 0 : index
    %1 = vector.load %arg4[%c0_1, %c0_2] : memref<144x128xf32, #tpu.memory_space<vmem>>, vector<128x128xf32>
    %cst = arith.constant dense<0.000000e+00> : vector<8x128xf32>
    %2 = tpu.matmul %0, %1, %cst {dimension_numbers = #tpu.dot_dimension_numbers<[1], [0], [0], [1], [0, 0, 1, 1], [], []>} : vector<8x128xf32>, vector<128x128xf32>, vector<8x128xf32> -> vector<8x128xf32>
    %3 = tpu.iota {dimensions = array<i32: 1>} : vector<8x8xi32>
    %c0_3 = arith.constant 0 : index
    %c0_4 = arith.constant 0 : index
    %4 = vector.load %arg2[%c0_3, %c0_4] : memref<8x1xi32, #tpu.memory_space<vmem>>, vector<8x1xi32>
    %5 = vector.broadcast %4 : vector<8x1xi32> to vector<8x8xi32>
    %6 = arith.cmpi eq, %3, %5 : vector<8x8xi32>
    %7 = arith.extui %6 : vector<8x8xi1> to vector<8x8xi32>
    %8 = arith.sitofp %7 : vector<8x8xi32> to vector<8x8xf32>
    %c128 = arith.constant 128 : index
    %c0_5 = arith.constant 0 : index
    %9 = vector.load %arg4[%c128, %c0_5] : memref<144x128xf32, #tpu.memory_space<vmem>>, vector<8x128xf32>
    %cst_6 = arith.constant dense<0.000000e+00> : vector<8x128xf32>
    %10 = tpu.matmul %8, %9, %cst_6 {dimension_numbers = #tpu.dot_dimension_numbers<[1], [0], [0], [1], [0, 0, 1, 1], [], []>} : vector<8x8xf32>, vector<8x128xf32>, vector<8x128xf32> -> vector<8x128xf32>
    %11 = arith.addf %2, %10 : vector<8x128xf32>
    %12 = tpu.iota {dimensions = array<i32: 1>} : vector<8x8xi32>
    %c0_7 = arith.constant 0 : index
    %c0_8 = arith.constant 0 : index
    %13 = vector.load %arg3[%c0_7, %c0_8] : memref<8x1xi32, #tpu.memory_space<vmem>>, vector<8x1xi32>
    %14 = vector.broadcast %13 : vector<8x1xi32> to vector<8x8xi32>
    %15 = arith.cmpi eq, %12, %14 : vector<8x8xi32>
    %16 = arith.extui %15 : vector<8x8xi1> to vector<8x8xi32>
    %17 = arith.sitofp %16 : vector<8x8xi32> to vector<8x8xf32>
    %c136 = arith.constant 136 : index
    %c0_9 = arith.constant 0 : index
    %18 = vector.load %arg4[%c136, %c0_9] : memref<144x128xf32, #tpu.memory_space<vmem>>, vector<8x128xf32>
    %cst_10 = arith.constant dense<0.000000e+00> : vector<8x128xf32>
    %19 = tpu.matmul %17, %18, %cst_10 {dimension_numbers = #tpu.dot_dimension_numbers<[1], [0], [0], [1], [0, 0, 1, 1], [], []>} : vector<8x8xf32>, vector<8x128xf32>, vector<8x128xf32> -> vector<8x128xf32>
    %20 = arith.addf %11, %19 : vector<8x128xf32>
    %c0_11 = arith.constant 0 : index
    %c0_12 = arith.constant 0 : index
    %c0_13 = arith.constant 0 : index
    %c0_14 = arith.constant 0 : index
    %21 = vector.load %arg5[%c0_11, %c0_12, %c0_13, %c0_14] : memref<3x1x1x128xf32, #tpu.memory_space<vmem>>, vector<1x1x1x128xf32>
    %22 = vector.shape_cast %21 : vector<1x1x1x128xf32> to vector<1x128xf32>
    %23 = vector.broadcast %22 : vector<1x128xf32> to vector<8x128xf32>
    %24 = arith.addf %20, %23 : vector<8x128xf32>
    %cst_15 = arith.constant 0.000000e+00 : f32
    %25 = vector.broadcast %cst_15 : f32 to vector<8x128xf32>
    %26 = arith.cmpf ogt, %24, %25 : vector<8x128xf32>
    %cst_16 = arith.constant 0.00999999977 : f32
    %27 = vector.broadcast %cst_16 : f32 to vector<8x128xf32>
    %28 = arith.mulf %27, %24 : vector<8x128xf32>
    %29 = arith.select %26, %24, %28 : vector<8x128xi1>, vector<8x128xf32>
    %c0_17 = arith.constant 0 : index
    %c0_18 = arith.constant 0 : index
    %c0_19 = arith.constant 0 : index
    %c0_20 = arith.constant 0 : index
    %30 = vector.load %arg6[%c0_17, %c0_18, %c0_19, %c0_20] : memref<2x1x128x128xf32, #tpu.memory_space<vmem>>, vector<1x1x128x128xf32>
    %31 = vector.shape_cast %30 : vector<1x1x128x128xf32> to vector<128x128xf32>
    %cst_21 = arith.constant dense<0.000000e+00> : vector<8x128xf32>
    %32 = tpu.matmul %29, %31, %cst_21 {dimension_numbers = #tpu.dot_dimension_numbers<[1], [0], [0], [1], [0, 0, 1, 1], [], []>} : vector<8x128xf32>, vector<128x128xf32>, vector<8x128xf32> -> vector<8x128xf32>
    %c1 = arith.constant 1 : index
    %c0_22 = arith.constant 0 : index
    %c0_23 = arith.constant 0 : index
    %c0_24 = arith.constant 0 : index
    %33 = vector.load %arg5[%c1, %c0_22, %c0_23, %c0_24] : memref<3x1x1x128xf32, #tpu.memory_space<vmem>>, vector<1x1x1x128xf32>
    %34 = vector.shape_cast %33 : vector<1x1x1x128xf32> to vector<1x128xf32>
    %35 = vector.broadcast %34 : vector<1x128xf32> to vector<8x128xf32>
    %36 = arith.addf %32, %35 : vector<8x128xf32>
    %cst_25 = arith.constant 0.000000e+00 : f32
    %37 = vector.broadcast %cst_25 : f32 to vector<8x128xf32>
    %38 = arith.cmpf ogt, %36, %37 : vector<8x128xf32>
    %cst_26 = arith.constant 0.00999999977 : f32
    %39 = vector.broadcast %cst_26 : f32 to vector<8x128xf32>
    %40 = arith.mulf %39, %36 : vector<8x128xf32>
    %41 = arith.select %38, %36, %40 : vector<8x128xi1>, vector<8x128xf32>
    %c1_27 = arith.constant 1 : index
    %c0_28 = arith.constant 0 : index
    %c0_29 = arith.constant 0 : index
    %c0_30 = arith.constant 0 : index
    %42 = vector.load %arg6[%c1_27, %c0_28, %c0_29, %c0_30] : memref<2x1x128x128xf32, #tpu.memory_space<vmem>>, vector<1x1x128x128xf32>
    %43 = vector.shape_cast %42 : vector<1x1x128x128xf32> to vector<128x128xf32>
    %cst_31 = arith.constant dense<0.000000e+00> : vector<8x128xf32>
    %44 = tpu.matmul %41, %43, %cst_31 {dimension_numbers = #tpu.dot_dimension_numbers<[1], [0], [0], [1], [0, 0, 1, 1], [], []>} : vector<8x128xf32>, vector<128x128xf32>, vector<8x128xf32> -> vector<8x128xf32>
    %c2 = arith.constant 2 : index
    %c0_32 = arith.constant 0 : index
    %c0_33 = arith.constant 0 : index
    %c0_34 = arith.constant 0 : index
    %45 = vector.load %arg5[%c2, %c0_32, %c0_33, %c0_34] : memref<3x1x1x128xf32, #tpu.memory_space<vmem>>, vector<1x1x1x128xf32>
    %46 = vector.shape_cast %45 : vector<1x1x1x128xf32> to vector<1x128xf32>
    %47 = vector.broadcast %46 : vector<1x128xf32> to vector<8x128xf32>
    %48 = arith.addf %44, %47 : vector<8x128xf32>
    %c0_35 = arith.constant 0 : index
    %c0_36 = arith.constant 0 : index
    %49 = vector.load %arg7[%c0_35, %c0_36] : memref<8x128xf32, #tpu.memory_space<vmem>>, vector<8x128xf32>
    tpu.vector_store %arg7[%c0_35, %c0_36], %48 {strides = array<i32>} : memref<8x128xf32, #tpu.memory_space<vmem>>, vector<8x128xf32>,
    return
  }
  func.func @transform_0(%arg0: i32) -> (i32, i32) {
    %c0_i32 = arith.constant 0 : i32
    %c0_i32_0 = arith.constant 0 : i32
    return %arg0, %c0_i32 : i32, i32
  }
  func.func @transform_1(%arg0: i32) -> (i32, i32) {
    %c0_i32 = arith.constant 0 : i32
    %c0_i32_0 = arith.constant 0 : i32
    return %arg0, %c0_i32 : i32, i32
  }
  func.func @transform_2(%arg0: i32) -> (i32, i32) {
    %c0_i32 = arith.constant 0 : i32
    %c0_i32_0 = arith.constant 0 : i32
    return %arg0, %c0_i32 : i32, i32
  }
  func.func @transform_3(%arg0: i32) -> (i32, i32) {
    %c0_i32 = arith.constant 0 : i32
    %c0_i32_0 = arith.constant 0 : i32
    %c0_i32_1 = arith.constant 0 : i32
    return %c0_i32, %c0_i32_0 : i32, i32
  }
  func.func @transform_4(%arg0: i32) -> (i32, i32, i32, i32) {
    %c0_i32 = arith.constant 0 : i32
    %c0_i32_0 = arith.constant 0 : i32
    %c0_i32_1 = arith.constant 0 : i32
    %c0_i32_2 = arith.constant 0 : i32
    %c0_i32_3 = arith.constant 0 : i32
    return %c0_i32, %c0_i32_0, %c0_i32_1, %c0_i32_2 : i32, i32, i32, i32
  }
  func.func @transform_5(%arg0: i32) -> (i32, i32, i32, i32) {
    %c0_i32 = arith.constant 0 : i32
    %c0_i32_0 = arith.constant 0 : i32
    %c0_i32_1 = arith.constant 0 : i32
    %c0_i32_2 = arith.constant 0 : i32
    %c0_i32_3 = arith.constant 0 : i32
    return %c0_i32, %c0_i32_0, %c0_i32_1, %c0_i32_2 : i32, i32, i32, i32
  }
  func.func @transform_6(%arg0: i32) -> (i32, i32) {
    %c0_i32 = arith.constant 0 : i32
    %c0_i32_0 = arith.constant 0 : i32
    return %arg0, %c0_i32 : i32, i32
  }
}

</mosaic_0001>

<llo_original>
// kernel: _forward.1
$region0: #{_forward.1}
  #allocation0 [shape = 'u32[]', space=smem, size = 0x4, offset = 0x4, fixed_abs, tag = 'smem constant byte address 0x4 - core index']
  #allocation1 [shape = 'u32[144,128]{1,0:T(1,128)}', space=vmem, size = 0x12000, scoped, tag = 'internal scratch']
  %s0 = inlined_call_operand.vmem [shape: f32[8,128], index: 0, kind: input, shape index: {}]
  %s1 = inlined_call_operand.vmem [shape: s32[8,1], index: 1, kind: input, shape index: {}]
  %s2 = inlined_call_operand.vmem [shape: s32[8,1], index: 2, kind: input, shape index: {}]
  %s3 = inlined_call_operand.hbm [shape: f32[144,128], index: 3, kind: input, shape index: {}]
  %s4 = inlined_call_operand.vmem [shape: f32[3,1,1,128], index: 4, kind: input, shape index: {}]
  %s5 = inlined_call_operand.hbm [shape: f32[2,1,128,128], index: 5, kind: input, shape index: {}]
  %s6 = inlined_call_operand.hbm [shape: f32[8,128], index: 6, kind: output, shape index: {}]
  %s7 = sld [smem:[#allocation0]]
  $region42: #{_forward.1} parent=0
    _
  %s9 = ssub.s32 1, %s7
  %s10 = scalar_select 0, %s9, %s7
  $region1: #{_forward.1} parent=0
    #allocation2 [shape = 'u8[73728]{0}', space=vmem, size = 0x12000, scoped, tag = 'input window, operand 3, single buffered']
    #allocation3 [shape = 's32[1]{0}', space=sflag, size = 0x4, scoped, tag = 'scoped memory for _forward.1']
    #allocation4 [shape = 's32[1]{0}', space=sflag, size = 0x4, scoped, tag = 'scoped memory for _forward.1']
    #allocation5 [shape = 'u8[131072]{0}', space=vmem, size = 0x20000, scoped, tag = 'input window, operand 5, single buffered']
    #allocation6 [shape = 's32[1]{0}', space=sflag, size = 0x4, scoped, tag = 'scoped memory for _forward.1']
    #allocation7 [shape = 'u8[4096]{0}', space=vmem, size = 0x1000, scoped, tag = 'output window, operand 0, single buffered']
    %11 = vsyncpa [#allocation3], 0
    %12 = vsyncpa [#allocation6], 0
    %13 = vsyncpa [#allocation4], 0
    // Predicated region
    $region2: #{_forward.1} parent=1 // pred_check
      _
    $region3: #{_forward.1} parent=1 // pred_check_branch
      %15 = sbr.rel (0) target = $region5
    $region4: #{_forward.1} parent=1 // pred_region
      _
    $region5: #{_forward.1} parent=1 // pred_fallthru
      _
    // Predicated region
    $region6: #{_forward.1} parent=1 // pred_check
      _
    $region7: #{_forward.1} parent=1 // pred_check_branch
      %17 = sbr.rel (0) target = $region9
    $region8: #{_forward.1} parent=1 // pred_region
      _
    $region9: #{_forward.1} parent=1 // pred_fallthru
      _
    // Predicated region
    $region10: #{_forward.1} parent=1 // pred_check
      _
    $region11: #{_forward.1} parent=1 // pred_check_branch
      %19 = sbr.rel (0) target = $region13
    $region12: #{_forward.1} parent=1 // pred_region
      _
    $region13: #{_forward.1} parent=1 // pred_fallthru
      _
    // Predicated region
    $region14: #{_forward.1} parent=1 // pred_check
      _
    $region15: #{_forward.1} parent=1 // pred_check_branch
      %21 = sbr.rel (0) target = $region17
    $region16: #{_forward.1} parent=1 // pred_region
      %s23 = ssub.s32 2304, 2304
      %24 = vsyncadd [#allocation3], %s23
      %s25 = sshll.u32 [#allocation2], 4
      %s26 = int_to_ptr.vmem [resolvable:$true] %s25
      %31 = dma.hbm_to_vmem [thread:$0]  %s3, 2304, %s26, [#allocation3], 128, 128, 8
    $region17: #{_forward.1} parent=1 // pred_fallthru
      _
    // Predicated region
    $region18: #{_forward.1} parent=1 // pred_check
      _
    $region19: #{_forward.1} parent=1 // pred_check_branch
      %33 = sbr.rel (0) target = $region21
    $region20: #{_forward.1} parent=1 // pred_region
      _
    $region21: #{_forward.1} parent=1 // pred_fallthru
      _
    // Predicated region
    $region22: #{_forward.1} parent=1 // pred_check
      _
    $region23: #{_forward.1} parent=1 // pred_check_branch
      %35 = sbr.rel (0) target = $region25
    $region24: #{_forward.1} parent=1 // pred_region
      %s37 = ssub.s32 4096, 4096
      %38 = vsyncadd [#allocation6], %s37
      %s39 = sshll.u32 [#allocation5], 4
      %s40 = int_to_ptr.vmem [resolvable:$true] %s39
      %45 = dma.hbm_to_vmem [thread:$0]  %s5, 4096, %s40, [#allocation6], 128, 128, 8
    $region25: #{_forward.1} parent=1 // pred_fallthru
      _
    // Predicated region
    $region26: #{_forward.1} parent=1 // pred_check
      _
    $region27: #{_forward.1} parent=1 // pred_check_branch
      %47 = sbr.rel (0) target = $region29
    $region28: #{_forward.1} parent=1 // pred_region
      %48 = dma.done [#allocation3], 2304
    $region29: #{_forward.1} parent=1 // pred_fallthru
      _
    // Predicated region
    $region30: #{_forward.1} parent=1 // pred_check
      _
    $region31: #{_forward.1} parent=1 // pred_check_branch
      %50 = sbr.rel (0) target = $region33
    $region32: #{_forward.1} parent=1 // pred_region
      %51 = dma.done [#allocation6], 4096
    $region33: #{_forward.1} parent=1 // pred_fallthru
      _
    %v52 = vld [vmem:[%s0] sm:$0xff]
    %v53 = vld [vmem:[#allocation2] sm:$0xff]
    %v54 = vld [vmem:[#allocation2 + $0x8] sm:$0xff]
    %v55 = vld [vmem:[#allocation2 + $0x10] sm:$0xff]
    %v56 = vld [vmem:[#allocation2 + $0x18] sm:$0xff]
    %v57 = vld [vmem:[#allocation2 + $0x20] sm:$0xff]
    %v58 = vld [vmem:[#allocation2 + $0x28] sm:$0xff]
    %v59 = vld [vmem:[#allocation2 + $0x30] sm:$0xff]
    %v60 = vld [vmem:[#allocation2 + $0x38] sm:$0xff]
    %v61 = vld [vmem:[#allocation2 + $0x40] sm:$0xff]
    %v62 = vld [vmem:[#allocation2 + $0x48] sm:$0xff]
    %v63 = vld [vmem:[#allocation2 + $0x50] sm:$0xff]
    %v64 = vld [vmem:[#allocation2 + $0x58] sm:$0xff]
    %v65 = vld [vmem:[#allocation2 + $0x60] sm:$0xff]
    %v66 = vld [vmem:[#allocation2 + $0x68] sm:$0xff]
    %v67 = vld [vmem:[#allocation2 + $0x70] sm:$0xff]
    %v68 = vld [vmem:[#allocation2 + $0x78] sm:$0xff]
    %v69 = vlaneseq
    %v70 = vand.u32 %v69, 127
    %v71 = vld [vmem:[%s1] sm:$0xff]
    %72 = vset.pattern.permute.xlu0 0
    %73 = vperm.xlu0 %72, %v71
    %v74 = vpop.permute.xlu0 %73
    %vm75 = vcmp.eq.s32.totalorder %v70, %v74
    %v76 = vsel %vm75, 1, 0
    %v77 = vcvt.s32.f32 %v76
    %v78 = vld [vmem:[#allocation2 + $0x80] sm:$0xff]
    %vm79 = vcmask 64512
    %v81 = vsel %vm79, %v77, 0
    %83 = vmatprep.subr.mxu0 0.0
    %84 = vmatpush1.msra.mxu0 %v78
    %85 = vmatprep.subr.mxu0 0.0
    %86 = vmatpush1.msra.mxu0 0.0
    %87 = vmatprep.subr.mxu0 0.0
    %88 = vmatpush1.msra.mxu0 0.0
    %89 = vmatprep.subr.mxu0 0.0
    %90 = vmatpush1.msra.mxu0 0.0
    %91 = vmatprep.subr.mxu0 0.0
    %92 = vmatpush1.msra.mxu0 0.0
    %93 = vmatprep.subr.mxu0 0.0
    %94 = vmatpush1.msra.mxu0 0.0
    %95 = vmatprep.subr.mxu0 0.0
    %96 = vmatpush1.msra.mxu0 0.0
    %97 = vmatprep.subr.mxu0 0.0
    %98 = vmatpush1.msra.mxu0 0.0
    %99 = vmatprep.subr.mxu0 0.0
    %100 = vmatpush1.msra.mxu0 0.0
    %101 = vmatprep.subr.mxu0 0.0
    %102 = vmatpush1.msra.mxu0 0.0
    %103 = vmatprep.subr.mxu0 0.0
    %104 = vmatpush1.msra.mxu0 0.0
    %105 = vmatprep.subr.mxu0 0.0
    %106 = vmatpush1.msra.mxu0 0.0
    %107 = vmatprep.subr.mxu0 0.0
    %108 = vmatpush1.msra.mxu0 0.0
    %109 = vmatprep.subr.mxu0 0.0
    %110 = vmatpush1.msra.mxu0 0.0
    %111 = vmatprep.subr.mxu0 0.0
    %112 = vmatpush1.msra.mxu0 0.0
    %113 = vmatprep.subr.mxu0 0.0
    %114 = vmatpush1.msra.mxu0 0.0
    %115 = vmatprep.subr.mxu0 0.0
    %116 = vmatpush1.msra.mxu0 0.0
    %117 = vmatprep.subr.mxu0 0.0
    %118 = vmatpush1.msra.mxu0 0.0
    %119 = vmatprep.subr.mxu0 0.0
    %120 = vmatpush1.msra.mxu0 0.0
    %121 = vmatprep.subr.mxu0 0.0
    %122 = vmatpush1.msra.mxu0 0.0
    %123 = vmatprep.subr.mxu0 0.0
    %124 = vmatpush1.msra.mxu0 0.0
    %125 = vmatprep.subr.mxu0 0.0
    %126 = vmatpush1.msra.mxu0 0.0
    %127 = vmatprep.subr.mxu0 0.0
    %128 = vmatpush1.msra.mxu0 0.0
    %129 = vmatprep.subr.mxu0 0.0
    %130 = vmatpush1.msra.mxu0 0.0
    %131 = vmatprep.subr.mxu0 0.0
    %132 = vmatpush1.msra.mxu0 0.0
    %133 = vmatprep.subr.mxu0 0.0
    %134 = vmatpush1.msra.mxu0 0.0
    %135 = vmatprep.subr.mxu0 0.0
    %136 = vmatpush1.msra.mxu0 0.0
    %137 = vmatprep.subr.mxu0 0.0
    %138 = vmatpush1.msra.mxu0 0.0
    %139 = vmatprep.subr.mxu0 0.0
    %140 = vmatpush1.msra.mxu0 0.0
    %141 = vmatprep.subr.mxu0 0.0
    %142 = vmatpush1.msra.mxu0 0.0
    %143 = vmatprep.subr.mxu0 0.0
    %144 = vmatpush1.msra.mxu0 0.0
    %145 = vmatprep.subr.mxu0 0.0
    %146 = vmatpush1.msra.mxu0 0.0
    %147 = vmatprep.mubr.f32.mxu0 0.0
    %148 = vmatmul.mubr.f32.gmra.mrb[0].mxu0 %v81
    %v149 = vpop.f32.mrb[0].mxu0
    %v150 = vadd.f32 0.0, %v149
    %v151 = vpop.f32.mrb[0].mxu0
    %152 = vdwg.mxu0
    %153 = vmatprep.subr.mxu0 0.0
    %154 = vmatpush1.msra.mxu0 %v53
    %155 = vmatprep.subr.mxu0 0.0
    %156 = vmatpush1.msra.mxu0 %v54
    %157 = vmatprep.subr.mxu0 0.0
    %158 = vmatpush1.msra.mxu0 %v55
    %159 = vmatprep.subr.mxu0 0.0
    %160 = vmatpush1.msra.mxu0 %v56
    %161 = vmatprep.subr.mxu0 0.0
    %162 = vmatpush1.msra.mxu0 %v57
    %163 = vmatprep.subr.mxu0 0.0
    %164 = vmatpush1.msra.mxu0 %v58
    %165 = vmatprep.subr.mxu0 0.0
    %166 = vmatpush1.msra.mxu0 %v59
    %167 = vmatprep.subr.mxu0 0.0
    %168 = vmatpush1.msra.mxu0 %v60
    %169 = vmatprep.subr.mxu0 0.0
    %170 = vmatpush1.msra.mxu0 %v61
    %171 = vmatprep.subr.mxu0 0.0
    %172 = vmatpush1.msra.mxu0 %v62
    %173 = vmatprep.subr.mxu0 0.0
    %174 = vmatpush1.msra.mxu0 %v63
    %175 = vmatprep.subr.mxu0 0.0
    %176 = vmatpush1.msra.mxu0 %v64
    %177 = vmatprep.subr.mxu0 0.0
    %178 = vmatpush1.msra.mxu0 %v65
    %179 = vmatprep.subr.mxu0 0.0
    %180 = vmatpush1.msra.mxu0 %v66
    %181 = vmatprep.subr.mxu0 0.0
    %182 = vmatpush1.msra.mxu0 %v67
    %183 = vmatprep.subr.mxu0 0.0
    %184 = vmatpush1.msra.mxu0 %v68
    %185 = vmatprep.subr.mxu0 0.0
    %186 = vmatpush1.msra.mxu0 0.0
    %187 = vmatprep.subr.mxu0 0.0
    %188 = vmatpush1.msra.mxu0 0.0
    %189 = vmatprep.subr.mxu0 0.0
    %190 = vmatpush1.msra.mxu0 0.0
    %191 = vmatprep.subr.mxu0 0.0
    %192 = vmatpush1.msra.mxu0 0.0
    %193 = vmatprep.subr.mxu0 0.0
    %194 = vmatpush1.msra.mxu0 0.0
    %195 = vmatprep.subr.mxu0 0.0
    %196 = vmatpush1.msra.mxu0 0.0
    %197 = vmatprep.subr.mxu0 0.0
    %198 = vmatpush1.msra.mxu0 0.0
    %199 = vmatprep.subr.mxu0 0.0
    %200 = vmatpush1.msra.mxu0 0.0
    %201 = vmatprep.subr.mxu0 0.0
    %202 = vmatpush1.msra.mxu0 0.0
    %203 = vmatprep.subr.mxu0 0.0
    %204 = vmatpush1.msra.mxu0 0.0
    %205 = vmatprep.subr.mxu0 0.0
    %206 = vmatpush1.msra.mxu0 0.0
    %207 = vmatprep.subr.mxu0 0.0
    %208 = vmatpush1.msra.mxu0 0.0
    %209 = vmatprep.subr.mxu0 0.0
    %210 = vmatpush1.msra.mxu0 0.0
    %211 = vmatprep.subr.mxu0 0.0
    %212 = vmatpush1.msra.mxu0 0.0
    %213 = vmatprep.subr.mxu0 0.0
    %214 = vmatpush1.msra.mxu0 0.0
    %215 = vmatprep.subr.mxu0 0.0
    %216 = vmatpush1.msra.mxu0 0.0
    %217 = vmatprep.mubr.f32.mxu0 0.0
    %218 = vmatmul.mubr.f32.gmra.mrb[0].mxu0 %v52
    %v219 = vpop.f32.mrb[0].mxu0
    %v220 = vadd.f32 %v150, %v219
    %v221 = vpop.f32.mrb[0].mxu0
    %222 = vdwg.mxu0
    %v223 = vld [vmem:[%s2] sm:$0xff]
    %224 = vset.pattern.permute.xlu0 0
    %225 = vperm.xlu0 %224, %v223
    %v226 = vpop.permute.xlu0 %225
    %vm227 = vcmp.eq.s32.totalorder %v70, %v226
    %v228 = vsel %vm227, 1, 0
    %v229 = vcvt.s32.f32 %v228
    %v230 = vld [vmem:[#allocation2 + $0x88] sm:$0xff]
    %v232 = vsel %vm79, %v229, 0
    %234 = vmatprep.subr.mxu0 0.0
    %235 = vmatpush1.msra.mxu0 %v230
    %236 = vmatprep.subr.mxu0 0.0
    %237 = vmatpush1.msra.mxu0 0.0
    %238 = vmatprep.subr.mxu0 0.0
    %239 = vmatpush1.msra.mxu0 0.0
    %240 = vmatprep.subr.mxu0 0.0
    %241 = vmatpush1.msra.mxu0 0.0
    %242 = vmatprep.subr.mxu0 0.0
    %243 = vmatpush1.msra.mxu0 0.0
    %244 = vmatprep.subr.mxu0 0.0
    %245 = vmatpush1.msra.mxu0 0.0
    %246 = vmatprep.subr.mxu0 0.0
    %247 = vmatpush1.msra.mxu0 0.0
    %248 = vmatprep.subr.mxu0 0.0
    %249 = vmatpush1.msra.mxu0 0.0
    %250 = vmatprep.subr.mxu0 0.0
    %251 = vmatpush1.msra.mxu0 0.0
    %252 = vmatprep.subr.mxu0 0.0
    %253 = vmatpush1.msra.mxu0 0.0
    %254 = vmatprep.subr.mxu0 0.0
    %255 = vmatpush1.msra.mxu0 0.0
    %256 = vmatprep.subr.mxu0 0.0
    %257 = vmatpush1.msra.mxu0 0.0
    %258 = vmatprep.subr.mxu0 0.0
    %259 = vmatpush1.msra.mxu0 0.0
    %260 = vmatprep.subr.mxu0 0.0
    %261 = vmatpush1.msra.mxu0 0.0
    %262 = vmatprep.subr.mxu0 0.0
    %263 = vmatpush1.msra.mxu0 0.0
    %264 = vmatprep.subr.mxu0 0.0
    %265 = vmatpush1.msra.mxu0 0.0
    %266 = vmatprep.subr.mxu0 0.0
    %267 = vmatpush1.msra.mxu0 0.0
    %268 = vmatprep.subr.mxu0 0.0
    %269 = vmatpush1.msra.mxu0 0.0
    %270 = vmatprep.subr.mxu0 0.0
    %271 = vmatpush1.msra.mxu0 0.0
    %272 = vmatprep.subr.mxu0 0.0
    %273 = vmatpush1.msra.mxu0 0.0
    %274 = vmatprep.subr.mxu0 0.0
    %275 = vmatpush1.msra.mxu0 0.0
    %276 = vmatprep.subr.mxu0 0.0
    %277 = vmatpush1.msra.mxu0 0.0
    %278 = vmatprep.subr.mxu0 0.0
    %279 = vmatpush1.msra.mxu0 0.0
    %280 = vmatprep.subr.mxu0 0.0
    %281 = vmatpush1.msra.mxu0 0.0
    %282 = vmatprep.subr.mxu0 0.0
    %283 = vmatpush1.msra.mxu0 0.0
    %284 = vmatprep.subr.mxu0 0.0
    %285 = vmatpush1.msra.mxu0 0.0
    %286 = vmatprep.subr.mxu0 0.0
    %287 = vmatpush1.msra.mxu0 0.0
    %288 = vmatprep.subr.mxu0 0.0
    %289 = vmatpush1.msra.mxu0 0.0
    %290 = vmatprep.subr.mxu0 0.0
    %291 = vmatpush1.msra.mxu0 0.0
    %292 = vmatprep.subr.mxu0 0.0
    %293 = vmatpush1.msra.mxu0 0.0
    %294 = vmatprep.subr.mxu0 0.0
    %295 = vmatpush1.msra.mxu0 0.0
    %296 = vmatprep.subr.mxu0 0.0
    %297 = vmatpush1.msra.mxu0 0.0
    %298 = vmatprep.mubr.f32.mxu0 0.0
    %299 = vmatmul.mubr.f32.gmra.mrb[0].mxu0 %v232
    %v300 = vpop.f32.mrb[0].mxu0
    %v301 = vadd.f32 0.0, %v300
    %v302 = vpop.f32.mrb[0].mxu0
    %303 = vdwg.mxu0
    %v304 = vadd.f32 %v220, %v301
    %v305 = vld [vmem:[%s4] sm:$0x1]
    %v307 = vlaneseq
    %v308 = vshrl.u32 %v307, 7
    %v309 = vsub.s32 0, %v308
    %v310 = vrot.slane %v305, %v309
    %v312 = vadd.f32 %v304, %v310
    %vm313 = vcmp.gt.f32.partialorder %v312, 0.0
    %v314 = vmul.f32 %v312, 0.01
    %v315 = vsel %vm313, %v312, %v314
    %v316 = vld [vmem:[#allocation5] sm:$0xff]
    %v317 = vld [vmem:[#allocation5 + $0x8] sm:$0xff]
    %v318 = vld [vmem:[#allocation5 + $0x10] sm:$0xff]
    %v319 = vld [vmem:[#allocation5 + $0x18] sm:$0xff]
    %v320 = vld [vmem:[#allocation5 + $0x20] sm:$0xff]
    %v321 = vld [vmem:[#allocation5 + $0x28] sm:$0xff]
    %v322 = vld [vmem:[#allocation5 + $0x30] sm:$0xff]
    %v323 = vld [vmem:[#allocation5 + $0x38] sm:$0xff]
    %v324 = vld [vmem:[#allocation5 + $0x40] sm:$0xff]
    %v325 = vld [vmem:[#allocation5 + $0x48] sm:$0xff]
    %v326 = vld [vmem:[#allocation5 + $0x50] sm:$0xff]
    %v327 = vld [vmem:[#allocation5 + $0x58] sm:$0xff]
    %v328 = vld [vmem:[#allocation5 + $0x60] sm:$0xff]
    %v329 = vld [vmem:[#allocation5 + $0x68] sm:$0xff]
    %v330 = vld [vmem:[#allocation5 + $0x70] sm:$0xff]
    %v331 = vld [vmem:[#allocation5 + $0x78] sm:$0xff]
    %s332 = scalar_lea.vmem %s4, 1
    %v333 = vld [vmem:[%s332] sm:$0x1]
    %v335 = vlaneseq
    %v336 = vshrl.u32 %v335, 7
    %v337 = vsub.s32 0, %v336
    %v338 = vrot.slane %v333, %v337
    %340 = vmatprep.subr.mxu0 0.0
    %341 = vmatpush1.msra.mxu0 %v316
    %342 = vmatprep.subr.mxu0 0.0
    %343 = vmatpush1.msra.mxu0 %v317
    %344 = vmatprep.subr.mxu0 0.0
    %345 = vmatpush1.msra.mxu0 %v318
    %346 = vmatprep.subr.mxu0 0.0
    %347 = vmatpush1.msra.mxu0 %v319
    %348 = vmatprep.subr.mxu0 0.0
    %349 = vmatpush1.msra.mxu0 %v320
    %350 = vmatprep.subr.mxu0 0.0
    %351 = vmatpush1.msra.mxu0 %v321
    %352 = vmatprep.subr.mxu0 0.0
    %353 = vmatpush1.msra.mxu0 %v322
    %354 = vmatprep.subr.mxu0 0.0
    %355 = vmatpush1.msra.mxu0 %v323
    %356 = vmatprep.subr.mxu0 0.0
    %357 = vmatpush1.msra.mxu0 %v324
    %358 = vmatprep.subr.mxu0 0.0
    %359 = vmatpush1.msra.mxu0 %v325
    %360 = vmatprep.subr.mxu0 0.0
    %361 = vmatpush1.msra.mxu0 %v326
    %362 = vmatprep.subr.mxu0 0.0
    %363 = vmatpush1.msra.mxu0 %v327
    %364 = vmatprep.subr.mxu0 0.0
    %365 = vmatpush1.msra.mxu0 %v328
    %366 = vmatprep.subr.mxu0 0.0
    %367 = vmatpush1.msra.mxu0 %v329
    %368 = vmatprep.subr.mxu0 0.0
    %369 = vmatpush1.msra.mxu0 %v330
    %370 = vmatprep.subr.mxu0 0.0
    %371 = vmatpush1.msra.mxu0 %v331
    %372 = vmatprep.subr.mxu0 0.0
    %373 = vmatpush1.msra.mxu0 0.0
    %374 = vmatprep.subr.mxu0 0.0
    %375 = vmatpush1.msra.mxu0 0.0
    %376 = vmatprep.subr.mxu0 0.0
    %377 = vmatpush1.msra.mxu0 0.0
    %378 = vmatprep.subr.mxu0 0.0
    %379 = vmatpush1.msra.mxu0 0.0
    %380 = vmatprep.subr.mxu0 0.0
    %381 = vmatpush1.msra.mxu0 0.0
    %382 = vmatprep.subr.mxu0 0.0
    %383 = vmatpush1.msra.mxu0 0.0
    %384 = vmatprep.subr.mxu0 0.0
    %385 = vmatpush1.msra.mxu0 0.0
    %386 = vmatprep.subr.mxu0 0.0
    %387 = vmatpush1.msra.mxu0 0.0
    %388 = vmatprep.subr.mxu0 0.0
    %389 = vmatpush1.msra.mxu0 0.0
    %390 = vmatprep.subr.mxu0 0.0
    %391 = vmatpush1.msra.mxu0 0.0
    %392 = vmatprep.subr.mxu0 0.0
    %393 = vmatpush1.msra.mxu0 0.0
    %394 = vmatprep.subr.mxu0 0.0
    %395 = vmatpush1.msra.mxu0 0.0
    %396 = vmatprep.subr.mxu0 0.0
    %397 = vmatpush1.msra.mxu0 0.0
    %398 = vmatprep.subr.mxu0 0.0
    %399 = vmatpush1.msra.mxu0 0.0
    %400 = vmatprep.subr.mxu0 0.0
    %401 = vmatpush1.msra.mxu0 0.0
    %402 = vmatprep.subr.mxu0 0.0
    %403 = vmatpush1.msra.mxu0 0.0
    %404 = vmatprep.mubr.f32.mxu0 0.0
    %405 = vmatmul.mubr.f32.gmra.mrb[0].mxu0 %v315
    %v406 = vpop.f32.mrb[0].mxu0
    %v407 = vadd.f32 %v338, %v406
    %v408 = vpop.f32.mrb[0].mxu0
    %409 = vdwg.mxu0
    %vm410 = vcmp.gt.f32.partialorder %v407, 0.0
    %v411 = vmul.f32 %v407, 0.01
    %v412 = vsel %vm410, %v407, %v411
    %s413 = scalar_lea.vmem [#allocation5], 128
    %v414 = vld [vmem:[%s413] sm:$0xff]
    %v415 = vld [vmem:[%s413 + $0x8] sm:$0xff]
    %v416 = vld [vmem:[%s413 + $0x10] sm:$0xff]
    %v417 = vld [vmem:[%s413 + $0x18] sm:$0xff]
    %v418 = vld [vmem:[%s413 + $0x20] sm:$0xff]
    %v419 = vld [vmem:[%s413 + $0x28] sm:$0xff]
    %v420 = vld [vmem:[%s413 + $0x30] sm:$0xff]
    %v421 = vld [vmem:[%s413 + $0x38] sm:$0xff]
    %v422 = vld [vmem:[%s413 + $0x40] sm:$0xff]
    %v423 = vld [vmem:[%s413 + $0x48] sm:$0xff]
    %v424 = vld [vmem:[%s413 + $0x50] sm:$0xff]
    %v425 = vld [vmem:[%s413 + $0x58] sm:$0xff]
    %v426 = vld [vmem:[%s413 + $0x60] sm:$0xff]
    %v427 = vld [vmem:[%s413 + $0x68] sm:$0xff]
    %v428 = vld [vmem:[%s413 + $0x70] sm:$0xff]
    %v429 = vld [vmem:[%s413 + $0x78] sm:$0xff]
    %s430 = scalar_lea.vmem %s4, 2
    %v431 = vld [vmem:[%s430] sm:$0x1]
    %v433 = vlaneseq
    %v434 = vshrl.u32 %v433, 7
    %v435 = vsub.s32 0, %v434
    %v436 = vrot.slane %v431, %v435
    %438 = vmatprep.subr.mxu0 0.0
    %439 = vmatpush1.msra.mxu0 %v414
    %440 = vmatprep.subr.mxu0 0.0
    %441 = vmatpush1.msra.mxu0 %v415
    %442 = vmatprep.subr.mxu0 0.0
    %443 = vmatpush1.msra.mxu0 %v416
    %444 = vmatprep.subr.mxu0 0.0
    %445 = vmatpush1.msra.mxu0 %v417
    %446 = vmatprep.subr.mxu0 0.0
    %447 = vmatpush1.msra.mxu0 %v418
    %448 = vmatprep.subr.mxu0 0.0
    %449 = vmatpush1.msra.mxu0 %v419
    %450 = vmatprep.subr.mxu0 0.0
    %451 = vmatpush1.msra.mxu0 %v420
    %452 = vmatprep.subr.mxu0 0.0
    %453 = vmatpush1.msra.mxu0 %v421
    %454 = vmatprep.subr.mxu0 0.0
    %455 = vmatpush1.msra.mxu0 %v422
    %456 = vmatprep.subr.mxu0 0.0
    %457 = vmatpush1.msra.mxu0 %v423
    %458 = vmatprep.subr.mxu0 0.0
    %459 = vmatpush1.msra.mxu0 %v424
    %460 = vmatprep.subr.mxu0 0.0
    %461 = vmatpush1.msra.mxu0 %v425
    %462 = vmatprep.subr.mxu0 0.0
    %463 = vmatpush1.msra.mxu0 %v426
    %464 = vmatprep.subr.mxu0 0.0
    %465 = vmatpush1.msra.mxu0 %v427
    %466 = vmatprep.subr.mxu0 0.0
    %467 = vmatpush1.msra.mxu0 %v428
    %468 = vmatprep.subr.mxu0 0.0
    %469 = vmatpush1.msra.mxu0 %v429
    %470 = vmatprep.subr.mxu0 0.0
    %471 = vmatpush1.msra.mxu0 0.0
    %472 = vmatprep.subr.mxu0 0.0
    %473 = vmatpush1.msra.mxu0 0.0
    %474 = vmatprep.subr.mxu0 0.0
    %475 = vmatpush1.msra.mxu0 0.0
    %476 = vmatprep.subr.mxu0 0.0
    %477 = vmatpush1.msra.mxu0 0.0
    %478 = vmatprep.subr.mxu0 0.0
    %479 = vmatpush1.msra.mxu0 0.0
    %480 = vmatprep.subr.mxu0 0.0
    %481 = vmatpush1.msra.mxu0 0.0
    %482 = vmatprep.subr.mxu0 0.0
    %483 = vmatpush1.msra.mxu0 0.0
    %484 = vmatprep.subr.mxu0 0.0
    %485 = vmatpush1.msra.mxu0 0.0
    %486 = vmatprep.subr.mxu0 0.0
    %487 = vmatpush1.msra.mxu0 0.0
    %488 = vmatprep.subr.mxu0 0.0
    %489 = vmatpush1.msra.mxu0 0.0
    %490 = vmatprep.subr.mxu0 0.0
    %491 = vmatpush1.msra.mxu0 0.0
    %492 = vmatprep.subr.mxu0 0.0
    %493 = vmatpush1.msra.mxu0 0.0
    %494 = vmatprep.subr.mxu0 0.0
    %495 = vmatpush1.msra.mxu0 0.0
    %496 = vmatprep.subr.mxu0 0.0
    %497 = vmatpush1.msra.mxu0 0.0
    %498 = vmatprep.subr.mxu0 0.0
    %499 = vmatpush1.msra.mxu0 0.0
    %500 = vmatprep.subr.mxu0 0.0
    %501 = vmatpush1.msra.mxu0 0.0
    %502 = vmatprep.mubr.f32.mxu0 0.0
    %503 = vmatmul.mubr.f32.gmra.mrb[0].mxu0 %v412
    %v504 = vpop.f32.mrb[0].mxu0
    %v505 = vadd.f32 %v436, %v504
    %v506 = vpop.f32.mrb[0].mxu0
    %507 = vdwg.mxu0
    %508 = vst [vmem:[#allocation7] sm:$0xff] %v505
    // Predicated region
    $region34: #{_forward.1} parent=1 // pred_check
      _
    $region35: #{_forward.1} parent=1 // pred_check_branch
      %510 = sbr.rel (0) target = $region37
    $region36: #{_forward.1} parent=1 // pred_region
      %s512 = ssub.s32 128, 128
      %513 = vsyncadd [#allocation4], %s512
      %s515 = sshll.u32 [#allocation7], 4
      %s516 = int_to_ptr.vmem [resolvable:$true] %s515
      %518 = dma.vmem_to_hbm [thread:$0]  %s516, 128, %s6, [#allocation4]
    $region37: #{_forward.1} parent=1 // pred_fallthru
      _
    // Predicated region
    $region38: #{_forward.1} parent=1 // pred_check
      _
    $region39: #{_forward.1} parent=1 // pred_check_branch
      %520 = sbr.rel (0) target = $region41
    $region40: #{_forward.1} parent=1 // pred_region
      %521 = dma.done [#allocation4], 128
    $region41: #{_forward.1} parent=1 // pred_fallthru
      _
    %522 = vsyncpa [#allocation3], 1
    %523 = vsyncpa [#allocation6], 1
    %524 = vsyncpa [#allocation4], 1

</llo_original>
